<compile_context>
chip_gen: v6e
topology: v6e:2x2x1
jax: 0.10.0
libtpu: 0.0.40
codegen_flags: <defaults>
</compile_context>

<pallas_src>
from functools import partial

import jax
import jax.numpy as jnp
from jax.experimental import pallas as pl
from jax.experimental.pallas import tpu as pltpu


def convnet_kernel(x_ref, se_ref, so_ref, wfc_ref, bfc_ref, out_ref):
    """Fused conv / pool / fc / sigmoid on one batch tile.

    x_ref:   VMEM (tile_n, C*300)  raw input rows, native layout
    se_ref:  VMEM (C*300, 75)      tap-selection matrix for even conv outputs (conv weights baked in)
    so_ref:  VMEM (C*300, 75)      tap-selection matrix for odd conv outputs
    wfc_ref: VMEM (75, nout)       fc weight, transposed
    bfc_ref: VMEM (1, nout)        fc bias with the conv bias folded in
    out_ref: VMEM (tile_n, nout)
    """
    x = x_ref[...]
    # Conv1d(k=2, s=2) + de-interleave of the two pool branches as MXU matmuls.
    conv_even = jnp.dot(x, se_ref[...], preferred_element_type=jnp.float32)   # (tile_n, 75)
    conv_odd = jnp.dot(x, so_ref[...], preferred_element_type=jnp.float32)    # (tile_n, 75)
    # MaxPool1d(2).  Conv bias is folded into bfc since max(a+cb, b+cb) == max(a, b) + cb.
    pooled = jnp.maximum(conv_even, conv_odd)                                 # (tile_n, 75)
    # Linear(75, nout) on the MXU; Dropout is identity in eval mode.
    y = jnp.dot(pooled, wfc_ref[...], preferred_element_type=jnp.float32) + bfc_ref[...]
    # Sigmoid (exp on the EUP, exact divide -> fp32 parity with the reference).
    out_ref[...] = 1.0 / (1.0 + jnp.exp(-y))


def _round_up(a, b):
    return ((a + b - 1) // b) * b


@partial(jax.jit, static_argnames=("tile_n",))
def conv_network_forward(x, conv_w, conv_b, fc_w, fc_b, *, tile_n=None):
    """x: (N, nin, 300) NCL; conv_w: (1, nin, 2); conv_b: (1,); fc_w: (nout, 75); fc_b: (nout,)."""
    N, C, L = x.shape
    assert L == 300, "fc expects 75 features => conv/pool input length must be 300"
    assert conv_w.shape == (1, C, 2), "kernel assumes Conv1d(nin, 1, kernel_size=2, stride=2)"
    nout = fc_w.shape[0]
    P = L // 4                      # 75 pooled positions
    CL = C * L

    # ---- small resident operands (built once per call, tiny) ----------------------------------
    w = conv_w[0].astype(jnp.float32)                               # (C, 2)
    eye_p = jnp.eye(P, dtype=jnp.float32)                           # (P, P)
    zero = jnp.zeros((C,), jnp.float32)
    # Tap weights per (channel, position-within-4): even conv output uses taps 0,1; odd uses 2,3.
    w_even = jnp.stack([w[:, 0], w[:, 1], zero, zero], axis=1)      # (C, 4)
    w_odd = jnp.stack([zero, zero, w[:, 0], w[:, 1]], axis=1)       # (C, 4)
    # S[c*300 + 4p + t, q] = w_branch[c, t] * (p == q): conv + de-interleave as one dense matmul.
    s_even = (w_even[:, None, :, None] * eye_p[None, :, None, :]).reshape(CL, P)
    s_odd = (w_odd[:, None, :, None] * eye_p[None, :, None, :]).reshape(CL, P)
    wfc_t = fc_w.astype(jnp.float32).T                              # (75, nout)
    # Fold the conv bias into the fc bias (exact: maxpool commutes with the uniform +cb shift).
    bfc = (fc_b.astype(jnp.float32)
           + conv_b[0].astype(jnp.float32) * fc_w.astype(jnp.float32).sum(axis=1)).reshape(1, nout)

    # Native-layout input view: (N, C, 300) -> (N, C*300) is a free reshape (no transpose, no copy).
    x_flat = x.reshape(N, CL).astype(jnp.float32)

    # ---- batch tiling --------------------------------------------------------------------------
    cap = 2048   # ~21 MiB double-buffered x tile at 2048: safe on v7x's 64 MiB VMEM, ample on v5e/v6e
    if tile_n is not None:
        tile = _round_up(max(8, min(int(tile_n), cap)), 8)
    elif N <= 256:
        tile = min(256, _round_up(N, 8))            # one small tile
    elif N < 2 * cap:
        tile = max(128, (N // 2) // 128 * 128)      # >= 2 grid steps so both v7x TensorCores get work
    else:
        tile = cap

    def run_tiles(x_rows, rows_out, tile_rows):
        return pl.pallas_call(
            convnet_kernel,
            out_shape=jax.ShapeDtypeStruct((rows_out, nout), jnp.float32),
            grid=(rows_out // tile_rows,),
            in_specs=[
                pl.BlockSpec((tile_rows, CL), lambda i: (i, 0)),    # batch tile (pipelined)
                pl.BlockSpec((CL, P), lambda i: (0, 0)),            # S_even (resident)
                pl.BlockSpec((CL, P), lambda i: (0, 0)),            # S_odd (resident)
                pl.BlockSpec((P, nout), lambda i: (0, 0)),          # fc weight^T (resident)
                pl.BlockSpec((1, nout), lambda i: (0, 0)),          # fused bias (resident)
            ],
            out_specs=pl.BlockSpec((tile_rows, nout), lambda i: (i, 0)),
            compiler_params=pltpu.CompilerParams(
                dimension_semantics=("parallel",),
                vmem_limit_bytes=48 * 1024 * 1024,
            ),
        )(x_rows, s_even, s_odd, wfc_t, bfc)

    m_full = (N // tile) * tile
    outs = []
    if m_full > 0:
        # Full tiles read straight out of x_flat (no pad, no copy); rows >= m_full are never touched.
        outs.append(run_tiles(x_flat, m_full, tile))
    rem = N - m_full
    if rem > 0:
        # Only the ragged tail (< one tile) is sliced and padded -- a bounded, cheap copy.
        rem8 = _round_up(rem, 8)
        x_tail = x_flat[m_full:]
        if rem8 != rem:
            x_tail = jnp.pad(x_tail, ((0, rem8 - rem), (0, 0)))
        outs.append(run_tiles(x_tail, rem8, rem8)[:rem])

    return outs[0] if len(outs) == 1 else jnp.concatenate(outs, axis=0)     # (N, nout)


def conv_network_reference(x, conv_w, conv_b, fc_w, fc_b):
    """Pure-JAX reference of the PyTorch forward (eval mode), float32."""
    N, C, L = x.shape
    xw = x.reshape(N, C, L // 2, 2)
    conv = jnp.einsum("nclk,ck->nl", xw, conv_w[0], precision="highest") + conv_b[0]   # (N, 150)
    pooled = conv.reshape(N, L // 4, 2).max(axis=-1)                                   # (N, 75)
    y = jnp.dot(pooled, fc_w.T, precision="highest") + fc_b                            # (N, nout)
    return jax.nn.sigmoid(y)


if __name__ == "__main__":
    N, nin, nout, L = 2, 4, 8, 300

    key = jax.random.PRNGKey(0)
    kx, kx2, kw1, kb1, kw2, kb2 = jax.random.split(key, 6)

    x = jax.random.normal(kx, (N, nin, L), dtype=jnp.float32)

    # Deterministic parameter init (uniform ranges mirroring PyTorch defaults).
    k1 = 1.0 / jnp.sqrt(jnp.float32(nin * 2))
    conv_w = jax.random.uniform(kw1, (1, nin, 2), jnp.float32, -k1, k1)
    conv_b = jax.random.uniform(kb1, (1,), jnp.float32, -k1, k1)
    k2 = 1.0 / jnp.sqrt(jnp.float32(75))
    fc_w = jax.random.uniform(kw2, (nout, 75), jnp.float32, -k2, k2)
    fc_b = jax.random.uniform(kb2, (nout,), jnp.float32, -k2, k2)

    # Small-batch check (tail-only path).
    out = jax.block_until_ready(conv_network_forward(x, conv_w, conv_b, fc_w, fc_b))
    ref = conv_network_reference(x, conv_w, conv_b, fc_w, fc_b)
    assert out.shape == (N, nout)
    assert jnp.allclose(out, ref, atol=2e-5, rtol=2e-5), "mismatch vs pure-JAX reference"

    # Multi-tile check: exercises the pipelined full-tile grid + ragged tail + concat path.
    N2 = 300
    xb = jax.random.normal(kx2, (N2, nin, L), dtype=jnp.float32)
    out2 = jax.block_until_ready(conv_network_forward(xb, conv_w, conv_b, fc_w, fc_b))
    ref2 = conv_network_reference(xb, conv_w, conv_b, fc_w, fc_b)
    assert out2.shape == (N2, nout)
    assert jnp.allclose(out2, ref2, atol=2e-5, rtol=2e-5), "mismatch on multi-tile batch"

    print("KERNEL_OK")
</pallas_src>

<mosaic_0001>
module attributes {stable_mosaic.version = 11 : i64} {
  func.func @convnet_kernel(%arg0: i32, %arg1: memref<8x1200xf32, #tpu.memory_space<vmem>>, %arg2: memref<1200x75xf32, #tpu.memory_space<vmem>>, %arg3: memref<1200x75xf32, #tpu.memory_space<vmem>>, %arg4: memref<75x8xf32, #tpu.memory_space<vmem>>, %arg5: memref<1x8xf32, #tpu.memory_space<vmem>>, %arg6: memref<8x8xf32, #tpu.memory_space<vmem>>) attributes {dimension_semantics = [#tpu.dimension_semantics<parallel>], iteration_bounds = array<i64: 1>, scalar_prefetch = 0 : i64, scratch_operands = 0 : i64, tpu.core_type = #tpu.core_type<tc>, window_params = [{transform_indices = @transform_0, window_bounds = array<i64: 8, 1200>}, {pipeline_mode = #tpu.pipeline_mode<synchronous>, transform_indices = @transform_1, window_bounds = array<i64: 1200, 75>}, {pipeline_mode = #tpu.pipeline_mode<synchronous>, transform_indices = @transform_2, window_bounds = array<i64: 1200, 75>}, {pipeline_mode = #tpu.pipeline_mode<synchronous>, transform_indices = @transform_3, window_bounds = array<i64: 75, 8>}, {pipeline_mode = #tpu.pipeline_mode<synchronous>, transform_indices = @transform_4, window_bounds = array<i64: 1, 8>}, {transform_indices = @transform_5, window_bounds = array<i64: 8, 8>}]} {
    %c0 = arith.constant 0 : index
    %c0_0 = arith.constant 0 : index
    %0 = vector.load %arg1[%c0, %c0_0] : memref<8x1200xf32, #tpu.memory_space<vmem>>, vector<8x1200xf32>
    %c0_1 = arith.constant 0 : index
    %c0_2 = arith.constant 0 : index
    %1 = vector.load %arg2[%c0_1, %c0_2] : memref<1200x75xf32, #tpu.memory_space<vmem>>, vector<1200x75xf32>
    %cst = arith.constant dense<0.000000e+00> : vector<8x75xf32>
    %2 = tpu.matmul %0, %1, %cst {dimension_numbers = #tpu.dot_dimension_numbers<[1], [0], [0], [1], [0, 0, 1, 1], [], []>} : vector<8x1200xf32>, vector<1200x75xf32>, vector<8x75xf32> -> vector<8x75xf32>
    %c0_3 = arith.constant 0 : index
    %c0_4 = arith.constant 0 : index
    %3 = vector.load %arg3[%c0_3, %c0_4] : memref<1200x75xf32, #tpu.memory_space<vmem>>, vector<1200x75xf32>
    %cst_5 = arith.constant dense<0.000000e+00> : vector<8x75xf32>
    %4 = tpu.matmul %0, %3, %cst_5 {dimension_numbers = #tpu.dot_dimension_numbers<[1], [0], [0], [1], [0, 0, 1, 1], [], []>} : vector<8x1200xf32>, vector<1200x75xf32>, vector<8x75xf32> -> vector<8x75xf32>
    %5 = arith.maximumf %2, %4 : vector<8x75xf32>
    %c0_6 = arith.constant 0 : index
    %c0_7 = arith.constant 0 : index
    %6 = vector.load %arg4[%c0_6, %c0_7] : memref<75x8xf32, #tpu.memory_space<vmem>>, vector<75x8xf32>
    %cst_8 = arith.constant dense<0.000000e+00> : vector<8x8xf32>
    %7 = tpu.matmul %5, %6, %cst_8 {dimension_numbers = #tpu.dot_dimension_numbers<[1], [0], [0], [1], [0, 0, 1, 1], [], []>} : vector<8x75xf32>, vector<75x8xf32>, vector<8x8xf32> -> vector<8x8xf32>
    %c0_9 = arith.constant 0 : index
    %c0_10 = arith.constant 0 : index
    %8 = vector.load %arg5[%c0_9, %c0_10] : memref<1x8xf32, #tpu.memory_space<vmem>>, vector<1x8xf32>
    %9 = vector.broadcast %8 : vector<1x8xf32> to vector<8x8xf32>
    %10 = arith.addf %7, %9 : vector<8x8xf32>
    %cst_11 = arith.constant 0.000000e+00 : f32
    %11 = vector.broadcast %cst_11 : f32 to vector<8x8xf32>
    %12 = arith.subf %11, %10 : vector<8x8xf32>
    %13 = math.exp %12 : vector<8x8xf32>
    %cst_12 = arith.constant 1.000000e+00 : f32
    %14 = vector.broadcast %cst_12 : f32 to vector<8x8xf32>
    %15 = arith.addf %14, %13 : vector<8x8xf32>
    %cst_13 = arith.constant 1.000000e+00 : f32
    %16 = vector.broadcast %cst_13 : f32 to vector<8x8xf32>
    %17 = arith.divf %16, %15 : vector<8x8xf32>
    %c0_14 = arith.constant 0 : index
    %c0_15 = arith.constant 0 : index
    %18 = vector.load %arg6[%c0_14, %c0_15] : memref<8x8xf32, #tpu.memory_space<vmem>>, vector<8x8xf32>
    tpu.vector_store %arg6[%c0_14, %c0_15], %17 {strides = array<i32>} : memref<8x8xf32, #tpu.memory_space<vmem>>, vector<8x8xf32>,
    return
  }
  func.func @transform_0(%arg0: i32) -> (i32, i32) {
    %c0_i32 = arith.constant 0 : i32
    %c0_i32_0 = arith.constant 0 : i32
    return %arg0, %c0_i32 : i32, i32
  }
  func.func @transform_1(%arg0: i32) -> (i32, i32) {
    %c0_i32 = arith.constant 0 : i32
    %c0_i32_0 = arith.constant 0 : i32
    %c0_i32_1 = arith.constant 0 : i32
    return %c0_i32, %c0_i32_0 : i32, i32
  }
  func.func @transform_2(%arg0: i32) -> (i32, i32) {
    %c0_i32 = arith.constant 0 : i32
    %c0_i32_0 = arith.constant 0 : i32
    %c0_i32_1 = arith.constant 0 : i32
    return %c0_i32, %c0_i32_0 : i32, i32
  }
  func.func @transform_3(%arg0: i32) -> (i32, i32) {
    %c0_i32 = arith.constant 0 : i32
    %c0_i32_0 = arith.constant 0 : i32
    %c0_i32_1 = arith.constant 0 : i32
    return %c0_i32, %c0_i32_0 : i32, i32
  }
  func.func @transform_4(%arg0: i32) -> (i32, i32) {
    %c0_i32 = arith.constant 0 : i32
    %c0_i32_0 = arith.constant 0 : i32
    %c0_i32_1 = arith.constant 0 : i32
    return %c0_i32, %c0_i32_0 : i32, i32
  }
  func.func @transform_5(%arg0: i32) -> (i32, i32) {
    %c0_i32 = arith.constant 0 : i32
    %c0_i32_0 = arith.constant 0 : i32
    return %arg0, %c0_i32 : i32, i32
  }
}

</mosaic_0001>

<llo_original>
// kernel: conv_network_forward.1
$region0: #{conv_network_forward.1}
  #allocation0 [shape = 'u32[]', space=smem, size = 0x4, offset = 0x4, fixed_abs, tag = 'smem constant byte address 0x4 - core index']
  #allocation1 [shape = 'u32[144,128]{1,0:T(1,128)}', space=vmem, size = 0x12000, scoped, tag = 'internal scratch']
  %s0 = inlined_call_operand.vmem [shape: f32[8,1200], index: 0, kind: input, shape index: {}]
  %s1 = inlined_call_operand.vmem [shape: f32[1200,75], index: 1, kind: input, shape index: {}]
  %s2 = inlined_call_operand.vmem [shape: f32[1200,75], index: 2, kind: input, shape index: {}]
  %s3 = inlined_call_operand.vmem [shape: f32[75,8], index: 3, kind: input, shape index: {}]
  %s4 = inlined_call_operand.vmem [shape: f32[1,8], index: 4, kind: input, shape index: {}]
  %s5 = inlined_call_operand.vmem [shape: f32[8,8], index: 5, kind: output, shape index: {}]
  %s6 = sld [smem:[#allocation0]]
  $region30: #{conv_network_forward.1} parent=0
    _
  %s8 = ssub.s32 1, %s6
  %s9 = scalar_select 0, %s8, %s6
  // Predicated region
  $region2: #{conv_network_forward.1} parent=0 // pred_check
    _
  $region3: #{conv_network_forward.1} parent=0 // pred_check_branch
    %11 = sbr.rel (0) target = $region5
  $region4: #{conv_network_forward.1} parent=0 // pred_region
    _
  $region5: #{conv_network_forward.1} parent=0 // pred_fallthru
    _
  // Predicated region
  $region6: #{conv_network_forward.1} parent=0 // pred_check
    _
  $region7: #{conv_network_forward.1} parent=0 // pred_check_branch
    %13 = sbr.rel (0) target = $region9
  $region8: #{conv_network_forward.1} parent=0 // pred_region
    _
  $region9: #{conv_network_forward.1} parent=0 // pred_fallthru
    _
  // Predicated region
  $region10: #{conv_network_forward.1} parent=0 // pred_check
    _
  $region11: #{conv_network_forward.1} parent=0 // pred_check_branch
    %15 = sbr.rel (0) target = $region13
  $region12: #{conv_network_forward.1} parent=0 // pred_region
    _
  $region13: #{conv_network_forward.1} parent=0 // pred_fallthru
    _
  // Predicated region
  $region14: #{conv_network_forward.1} parent=0 // pred_check
    _
  $region15: #{conv_network_forward.1} parent=0 // pred_check_branch
    %17 = sbr.rel (0) target = $region17
  $region16: #{conv_network_forward.1} parent=0 // pred_region
    _
  $region17: #{conv_network_forward.1} parent=0 // pred_fallthru
    _
  // Predicated region
  $region18: #{conv_network_forward.1} parent=0 // pred_check
    _
  $region19: #{conv_network_forward.1} parent=0 // pred_check_branch
    %19 = sbr.rel (0) target = $region21
  $region20: #{conv_network_forward.1} parent=0 // pred_region
    _
  $region21: #{conv_network_forward.1} parent=0 // pred_fallthru
    _
  %v20 = vld [vmem:[%s0] sm:$0xff]
  %v21 = vld [vmem:[%s0 + $0x8] sm:$0xff]
  %v22 = vld [vmem:[%s0 + $0x10] sm:$0xff]
  %v23 = vld [vmem:[%s0 + $0x18] sm:$0xff]
  %v24 = vld [vmem:[%s0 + $0x20] sm:$0xff]
  %v25 = vld [vmem:[%s0 + $0x28] sm:$0xff]
  %v26 = vld [vmem:[%s0 + $0x30] sm:$0xff]
  %v27 = vld [vmem:[%s0 + $0x38] sm:$0xff]
  %v28 = vld [vmem:[%s0 + $0x40] sm:$0xff]
  %v29 = vld [vmem:[%s0 + $0x48] sm:$0xff]
  %v30 = vld [vmem:[%s1] sm:$0xff]
  %v31 = vld [vmem:[%s1 + $0x8] sm:$0xff]
  %v32 = vld [vmem:[%s1 + $0x10] sm:$0xff]
  %v33 = vld [vmem:[%s1 + $0x18] sm:$0xff]
  %v34 = vld [vmem:[%s1 + $0x20] sm:$0xff]
  %v35 = vld [vmem:[%s1 + $0x28] sm:$0xff]
  %v36 = vld [vmem:[%s1 + $0x30] sm:$0xff]
  %v37 = vld [vmem:[%s1 + $0x38] sm:$0xff]
  %v38 = vld [vmem:[%s1 + $0x40] sm:$0xff]
  %v39 = vld [vmem:[%s1 + $0x48] sm:$0xff]
  %v40 = vld [vmem:[%s1 + $0x50] sm:$0xff]
  %v41 = vld [vmem:[%s1 + $0x58] sm:$0xff]
  %v42 = vld [vmem:[%s1 + $0x60] sm:$0xff]
  %v43 = vld [vmem:[%s1 + $0x68] sm:$0xff]
  %v44 = vld [vmem:[%s1 + $0x70] sm:$0xff]
  %v45 = vld [vmem:[%s1 + $0x78] sm:$0xff]
  %v46 = vld [vmem:[%s1 + $0x80] sm:$0xff]
  %v47 = vld [vmem:[%s1 + $0x88] sm:$0xff]
  %v48 = vld [vmem:[%s1 + $0x90] sm:$0xff]
  %v49 = vld [vmem:[%s1 + $0x98] sm:$0xff]
  %v50 = vld [vmem:[%s1 + $0xa0] sm:$0xff]
  %v51 = vld [vmem:[%s1 + $0xa8] sm:$0xff]
  %v52 = vld [vmem:[%s1 + $0xb0] sm:$0xff]
  %v53 = vld [vmem:[%s1 + $0xb8] sm:$0xff]
  %v54 = vld [vmem:[%s1 + $0xc0] sm:$0xff]
  %v55 = vld [vmem:[%s1 + $0xc8] sm:$0xff]
  %v56 = vld [vmem:[%s1 + $0xd0] sm:$0xff]
  %v57 = vld [vmem:[%s1 + $0xd8] sm:$0xff]
  %v58 = vld [vmem:[%s1 + $0xe0] sm:$0xff]
  %v59 = vld [vmem:[%s1 + $0xe8] sm:$0xff]
  %v60 = vld [vmem:[%s1 + $0xf0] sm:$0xff]
  %v61 = vld [vmem:[%s1 + $0xf8] sm:$0xff]
  %v62 = vld [vmem:[%s1 + $0x100] sm:$0xff]
  %v63 = vld [vmem:[%s1 + $0x108] sm:$0xff]
  %v64 = vld [vmem:[%s1 + $0x110] sm:$0xff]
  %v65 = vld [vmem:[%s1 + $0x118] sm:$0xff]
  %v66 = vld [vmem:[%s1 + $0x120] sm:$0xff]
  %v67 = vld [vmem:[%s1 + $0x128] sm:$0xff]
  %v68 = vld [vmem:[%s1 + $0x130] sm:$0xff]
  %v69 = vld [vmem:[%s1 + $0x138] sm:$0xff]
  %v70 = vld [vmem:[%s1 + $0x140] sm:$0xff]
  %v71 = vld [vmem:[%s1 + $0x148] sm:$0xff]
  %v72 = vld [vmem:[%s1 + $0x150] sm:$0xff]
  %v73 = vld [vmem:[%s1 + $0x158] sm:$0xff]
  %v74 = vld [vmem:[%s1 + $0x160] sm:$0xff]
  %v75 = vld [vmem:[%s1 + $0x168] sm:$0xff]
  %v76 = vld [vmem:[%s1 + $0x170] sm:$0xff]
  %v77 = vld [vmem:[%s1 + $0x178] sm:$0xff]
  %v78 = vld [vmem:[%s1 + $0x180] sm:$0xff]
  %v79 = vld [vmem:[%s1 + $0x188] sm:$0xff]
  %v80 = vld [vmem:[%s1 + $0x190] sm:$0xff]
  %v81 = vld [vmem:[%s1 + $0x198] sm:$0xff]
  %v82 = vld [vmem:[%s1 + $0x1a0] sm:$0xff]
  %v83 = vld [vmem:[%s1 + $0x1a8] sm:$0xff]
  %v84 = vld [vmem:[%s1 + $0x1b0] sm:$0xff]
  %v85 = vld [vmem:[%s1 + $0x1b8] sm:$0xff]
  %v86 = vld [vmem:[%s1 + $0x1c0] sm:$0xff]
  %v87 = vld [vmem:[%s1 + $0x1c8] sm:$0xff]
  %v88 = vld [vmem:[%s1 + $0x1d0] sm:$0xff]
  %v89 = vld [vmem:[%s1 + $0x1d8] sm:$0xff]
  %v90 = vld [vmem:[%s1 + $0x1e0] sm:$0xff]
  %v91 = vld [vmem:[%s1 + $0x1e8] sm:$0xff]
  %v92 = vld [vmem:[%s1 + $0x1f0] sm:$0xff]
  %v93 = vld [vmem:[%s1 + $0x1f8] sm:$0xff]
  %v94 = vld [vmem:[%s1 + $0x200] sm:$0xff]
  %v95 = vld [vmem:[%s1 + $0x208] sm:$0xff]
  %v96 = vld [vmem:[%s1 + $0x210] sm:$0xff]
  %v97 = vld [vmem:[%s1 + $0x218] sm:$0xff]
  %v98 = vld [vmem:[%s1 + $0x220] sm:$0xff]
  %v99 = vld [vmem:[%s1 + $0x228] sm:$0xff]
  %v100 = vld [vmem:[%s1 + $0x230] sm:$0xff]
  %v101 = vld [vmem:[%s1 + $0x238] sm:$0xff]
  %v102 = vld [vmem:[%s1 + $0x240] sm:$0xff]
  %v103 = vld [vmem:[%s1 + $0x248] sm:$0xff]
  %v104 = vld [vmem:[%s1 + $0x250] sm:$0xff]
  %v105 = vld [vmem:[%s1 + $0x258] sm:$0xff]
  %v106 = vld [vmem:[%s1 + $0x260] sm:$0xff]
  %v107 = vld [vmem:[%s1 + $0x268] sm:$0xff]
  %v108 = vld [vmem:[%s1 + $0x270] sm:$0xff]
  %v109 = vld [vmem:[%s1 + $0x278] sm:$0xff]
  %v110 = vld [vmem:[%s1 + $0x280] sm:$0xff]
  %v111 = vld [vmem:[%s1 + $0x288] sm:$0xff]
  %v112 = vld [vmem:[%s1 + $0x290] sm:$0xff]
  %v113 = vld [vmem:[%s1 + $0x298] sm:$0xff]
  %v114 = vld [vmem:[%s1 + $0x2a0] sm:$0xff]
  %v115 = vld [vmem:[%s1 + $0x2a8] sm:$0xff]
  %v116 = vld [vmem:[%s1 + $0x2b0] sm:$0xff]
  %v117 = vld [vmem:[%s1 + $0x2b8] sm:$0xff]
  %v118 = vld [vmem:[%s1 + $0x2c0] sm:$0xff]
  %v119 = vld [vmem:[%s1 + $0x2c8] sm:$0xff]
  %v120 = vld [vmem:[%s1 + $0x2d0] sm:$0xff]
  %v121 = vld [vmem:[%s1 + $0x2d8] sm:$0xff]
  %v122 = vld [vmem:[%s1 + $0x2e0] sm:$0xff]
  %v123 = vld [vmem:[%s1 + $0x2e8] sm:$0xff]
  %v124 = vld [vmem:[%s1 + $0x2f0] sm:$0xff]
  %v125 = vld [vmem:[%s1 + $0x2f8] sm:$0xff]
  %v126 = vld [vmem:[%s1 + $0x300] sm:$0xff]
  %v127 = vld [vmem:[%s1 + $0x308] sm:$0xff]
  %v128 = vld [vmem:[%s1 + $0x310] sm:$0xff]
  %v129 = vld [vmem:[%s1 + $0x318] sm:$0xff]
  %v130 = vld [vmem:[%s1 + $0x320] sm:$0xff]
  %v131 = vld [vmem:[%s1 + $0x328] sm:$0xff]
  %v132 = vld [vmem:[%s1 + $0x330] sm:$0xff]
  %v133 = vld [vmem:[%s1 + $0x338] sm:$0xff]
  %v134 = vld [vmem:[%s1 + $0x340] sm:$0xff]
  %v135 = vld [vmem:[%s1 + $0x348] sm:$0xff]
  %v136 = vld [vmem:[%s1 + $0x350] sm:$0xff]
  %v137 = vld [vmem:[%s1 + $0x358] sm:$0xff]
  %v138 = vld [vmem:[%s1 + $0x360] sm:$0xff]
  %v139 = vld [vmem:[%s1 + $0x368] sm:$0xff]
  %v140 = vld [vmem:[%s1 + $0x370] sm:$0xff]
  %v141 = vld [vmem:[%s1 + $0x378] sm:$0xff]
  %v142 = vld [vmem:[%s1 + $0x380] sm:$0xff]
  %v143 = vld [vmem:[%s1 + $0x388] sm:$0xff]
  %v144 = vld [vmem:[%s1 + $0x390] sm:$0xff]
  %v145 = vld [vmem:[%s1 + $0x398] sm:$0xff]
  %v146 = vld [vmem:[%s1 + $0x3a0] sm:$0xff]
  %v147 = vld [vmem:[%s1 + $0x3a8] sm:$0xff]
  %v148 = vld [vmem:[%s1 + $0x3b0] sm:$0xff]
  %v149 = vld [vmem:[%s1 + $0x3b8] sm:$0xff]
  %v150 = vld [vmem:[%s1 + $0x3c0] sm:$0xff]
  %v151 = vld [vmem:[%s1 + $0x3c8] sm:$0xff]
  %v152 = vld [vmem:[%s1 + $0x3d0] sm:$0xff]
  %v153 = vld [vmem:[%s1 + $0x3d8] sm:$0xff]
  %v154 = vld [vmem:[%s1 + $0x3e0] sm:$0xff]
  %v155 = vld [vmem:[%s1 + $0x3e8] sm:$0xff]
  %v156 = vld [vmem:[%s1 + $0x3f0] sm:$0xff]
  %v157 = vld [vmem:[%s1 + $0x3f8] sm:$0xff]
  %v158 = vld [vmem:[%s1 + $0x400] sm:$0xff]
  %v159 = vld [vmem:[%s1 + $0x408] sm:$0xff]
  %v160 = vld [vmem:[%s1 + $0x410] sm:$0xff]
  %v161 = vld [vmem:[%s1 + $0x418] sm:$0xff]
  %v162 = vld [vmem:[%s1 + $0x420] sm:$0xff]
  %v163 = vld [vmem:[%s1 + $0x428] sm:$0xff]
  %v164 = vld [vmem:[%s1 + $0x430] sm:$0xff]
  %v165 = vld [vmem:[%s1 + $0x438] sm:$0xff]
  %v166 = vld [vmem:[%s1 + $0x440] sm:$0xff]
  %v167 = vld [vmem:[%s1 + $0x448] sm:$0xff]
  %v168 = vld [vmem:[%s1 + $0x450] sm:$0xff]
  %v169 = vld [vmem:[%s1 + $0x458] sm:$0xff]
  %v170 = vld [vmem:[%s1 + $0x460] sm:$0xff]
  %v171 = vld [vmem:[%s1 + $0x468] sm:$0xff]
  %v172 = vld [vmem:[%s1 + $0x470] sm:$0xff]
  %v173 = vld [vmem:[%s1 + $0x478] sm:$0xff]
  %v174 = vld [vmem:[%s1 + $0x480] sm:$0xff]
  %v175 = vld [vmem:[%s1 + $0x488] sm:$0xff]
  %v176 = vld [vmem:[%s1 + $0x490] sm:$0xff]
  %v177 = vld [vmem:[%s1 + $0x498] sm:$0xff]
  %v178 = vld [vmem:[%s1 + $0x4a0] sm:$0xff]
  %v179 = vld [vmem:[%s1 + $0x4a8] sm:$0xff]
  %vm180 = vcmask 392192
  %v182 = vsel %vm180, %v29, 0
  %184 = vmatprep.subr.mxu0 0.0
  %185 = vmatpush1.msra.mxu0 %v45
  %186 = vmatprep.subr.mxu0 0.0
  %187 = vmatpush1.msra.mxu0 %v44
  %188 = vmatprep.subr.mxu0 0.0
  %189 = vmatpush1.msra.mxu0 %v43
  %190 = vmatprep.subr.mxu0 0.0
  %191 = vmatpush1.msra.mxu0 %v42
  %192 = vmatprep.subr.mxu0 0.0
  %193 = vmatpush1.msra.mxu0 %v41
  %194 = vmatprep.subr.mxu0 0.0
  %195 = vmatpush1.msra.mxu0 %v40
  %196 = vmatprep.subr.mxu0 0.0
  %197 = vmatpush1.msra.mxu0 %v39
  %198 = vmatprep.subr.mxu0 0.0
  %199 = vmatpush1.msra.mxu0 %v38
  %200 = vmatprep.subr.mxu0 0.0
  %201 = vmatpush1.msra.mxu0 %v37
  %202 = vmatprep.subr.mxu0 0.0
  %203 = vmatpush1.msra.mxu0 %v36
  %204 = vmatprep.subr.mxu0 0.0
  %205 = vmatpush1.msra.mxu0 %v35
  %206 = vmatprep.subr.mxu0 0.0
  %207 = vmatpush1.msra.mxu0 %v34
  %208 = vmatprep.subr.mxu0 0.0
  %209 = vmatpush1.msra.mxu0 %v33
  %210 = vmatprep.subr.mxu0 0.0
  %211 = vmatpush1.msra.mxu0 %v32
  %212 = vmatprep.subr.mxu0 0.0
  %213 = vmatpush1.msra.mxu0 %v31
  %214 = vmatprep.subr.mxu0 0.0
  %215 = vmatpush1.msra.mxu0 %v30
  %216 = vmatprep.subr.mxu0 0.0
  %217 = vmatpush2.msra.mxu0 %v61
  %218 = vmatprep.subr.mxu0 0.0
  %219 = vmatpush2.msra.mxu0 %v60
  %220 = vmatprep.subr.mxu0 0.0
  %221 = vmatpush2.msra.mxu0 %v59
  %222 = vmatprep.subr.mxu0 0.0
  %223 = vmatpush2.msra.mxu0 %v58
  %224 = vmatprep.subr.mxu0 0.0
  %225 = vmatpush2.msra.mxu0 %v57
  %226 = vmatprep.subr.mxu0 0.0
  %227 = vmatpush2.msra.mxu0 %v56
  %228 = vmatprep.subr.mxu0 0.0
  %229 = vmatpush2.msra.mxu0 %v55
  %230 = vmatprep.subr.mxu0 0.0
  %231 = vmatpush2.msra.mxu0 %v54
  %232 = vmatprep.subr.mxu0 0.0
  %233 = vmatpush2.msra.mxu0 %v53
  %234 = vmatprep.subr.mxu0 0.0
  %235 = vmatpush2.msra.mxu0 %v52
  %236 = vmatprep.subr.mxu0 0.0
  %237 = vmatpush2.msra.mxu0 %v51
  %238 = vmatprep.subr.mxu0 0.0
  %239 = vmatpush2.msra.mxu0 %v50
  %240 = vmatprep.subr.mxu0 0.0
  %241 = vmatpush2.msra.mxu0 %v49
  %242 = vmatprep.subr.mxu0 0.0
  %243 = vmatpush2.msra.mxu0 %v48
  %244 = vmatprep.subr.mxu0 0.0
  %245 = vmatpush2.msra.mxu0 %v47
  %246 = vmatprep.subr.mxu0 0.0
  %247 = vmatpush2.msra.mxu0 %v46
  %248 = vmatprep.mubr.f32.mxu0 %v21
  %249 = vmatmul.mubr.f32.gmra.mxu0 %v20
  %v250 = vpop.f32.mrf.mxu0
  %v251 = vadd.f32 0.0, %v250
  %v252 = vpop.f32.mrf.mxu0
  %253 = vdwg.mxu0
  %254 = vmatprep.subr.mxu0 0.0
  %255 = vmatpush1.msra.mxu0 %v77
  %256 = vmatprep.subr.mxu0 0.0
  %257 = vmatpush1.msra.mxu0 %v76
  %258 = vmatprep.subr.mxu0 0.0
  %259 = vmatpush1.msra.mxu0 %v75
  %260 = vmatprep.subr.mxu0 0.0
  %261 = vmatpush1.msra.mxu0 %v74
  %262 = vmatprep.subr.mxu0 0.0
  %263 = vmatpush1.msra.mxu0 %v73
  %264 = vmatprep.subr.mxu0 0.0
  %265 = vmatpush1.msra.mxu0 %v72
  %266 = vmatprep.subr.mxu0 0.0
  %267 = vmatpush1.msra.mxu0 %v71
  %268 = vmatprep.subr.mxu0 0.0
  %269 = vmatpush1.msra.mxu0 %v70
  %270 = vmatprep.subr.mxu0 0.0
  %271 = vmatpush1.msra.mxu0 %v69
  %272 = vmatprep.subr.mxu0 0.0
  %273 = vmatpush1.msra.mxu0 %v68
  %274 = vmatprep.subr.mxu0 0.0
  %275 = vmatpush1.msra.mxu0 %v67
  %276 = vmatprep.subr.mxu0 0.0
  %277 = vmatpush1.msra.mxu0 %v66
  %278 = vmatprep.subr.mxu0 0.0
  %279 = vmatpush1.msra.mxu0 %v65
  %280 = vmatprep.subr.mxu0 0.0
  %281 = vmatpush1.msra.mxu0 %v64
  %282 = vmatprep.subr.mxu0 0.0
  %283 = vmatpush1.msra.mxu0 %v63
  %284 = vmatprep.subr.mxu0 0.0
  %285 = vmatpush1.msra.mxu0 %v62
  %286 = vmatprep.subr.mxu0 0.0
  %287 = vmatpush2.msra.mxu0 %v93
  %288 = vmatprep.subr.mxu0 0.0
  %289 = vmatpush2.msra.mxu0 %v92
  %290 = vmatprep.subr.mxu0 0.0
  %291 = vmatpush2.msra.mxu0 %v91
  %292 = vmatprep.subr.mxu0 0.0
  %293 = vmatpush2.msra.mxu0 %v90
  %294 = vmatprep.subr.mxu0 0.0
  %295 = vmatpush2.msra.mxu0 %v89
  %296 = vmatprep.subr.mxu0 0.0
  %297 = vmatpush2.msra.mxu0 %v88
  %298 = vmatprep.subr.mxu0 0.0
  %299 = vmatpush2.msra.mxu0 %v87
  %300 = vmatprep.subr.mxu0 0.0
  %301 = vmatpush2.msra.mxu0 %v86
  %302 = vmatprep.subr.mxu0 0.0
  %303 = vmatpush2.msra.mxu0 %v85
  %304 = vmatprep.subr.mxu0 0.0
  %305 = vmatpush2.msra.mxu0 %v84
  %306 = vmatprep.subr.mxu0 0.0
  %307 = vmatpush2.msra.mxu0 %v83
  %308 = vmatprep.subr.mxu0 0.0
  %309 = vmatpush2.msra.mxu0 %v82
  %310 = vmatprep.subr.mxu0 0.0
  %311 = vmatpush2.msra.mxu0 %v81
  %312 = vmatprep.subr.mxu0 0.0
  %313 = vmatpush2.msra.mxu0 %v80
  %314 = vmatprep.subr.mxu0 0.0
  %315 = vmatpush2.msra.mxu0 %v79
  %316 = vmatprep.subr.mxu0 0.0
  %317 = vmatpush2.msra.mxu0 %v78
  %318 = vmatprep.mubr.f32.mxu0 %v23
  %319 = vmatmul.mubr.f32.gmra.mxu0 %v22
  %v320 = vpop.f32.mrf.mxu0
  %v321 = vadd.f32 %v251, %v320
  %v322 = vpop.f32.mrf.mxu0
  %323 = vdwg.mxu0
  %324 = vmatprep.subr.mxu0 0.0
  %325 = vmatpush1.msra.mxu0 %v109
  %326 = vmatprep.subr.mxu0 0.0
  %327 = vmatpush1.msra.mxu0 %v108
  %328 = vmatprep.subr.mxu0 0.0
  %329 = vmatpush1.msra.mxu0 %v107
  %330 = vmatprep.subr.mxu0 0.0
  %331 = vmatpush1.msra.mxu0 %v106
  %332 = vmatprep.subr.mxu0 0.0
  %333 = vmatpush1.msra.mxu0 %v105
  %334 = vmatprep.subr.mxu0 0.0
  %335 = vmatpush1.msra.mxu0 %v104
  %336 = vmatprep.subr.mxu0 0.0
  %337 = vmatpush1.msra.mxu0 %v103
  %338 = vmatprep.subr.mxu0 0.0
  %339 = vmatpush1.msra.mxu0 %v102
  %340 = vmatprep.subr.mxu0 0.0
  %341 = vmatpush1.msra.mxu0 %v101
  %342 = vmatprep.subr.mxu0 0.0
  %343 = vmatpush1.msra.mxu0 %v100
  %344 = vmatprep.subr.mxu0 0.0
  %345 = vmatpush1.msra.mxu0 %v99
  %346 = vmatprep.subr.mxu0 0.0
  %347 = vmatpush1.msra.mxu0 %v98
  %348 = vmatprep.subr.mxu0 0.0
  %349 = vmatpush1.msra.mxu0 %v97
  %350 = vmatprep.subr.mxu0 0.0
  %351 = vmatpush1.msra.mxu0 %v96
  %352 = vmatprep.subr.mxu0 0.0
  %353 = vmatpush1.msra.mxu0 %v95
  %354 = vmatprep.subr.mxu0 0.0
  %355 = vmatpush1.msra.mxu0 %v94
  %356 = vmatprep.subr.mxu0 0.0
  %357 = vmatpush2.msra.mxu0 %v125
  %358 = vmatprep.subr.mxu0 0.0
  %359 = vmatpush2.msra.mxu0 %v124
  %360 = vmatprep.subr.mxu0 0.0
  %361 = vmatpush2.msra.mxu0 %v123
  %362 = vmatprep.subr.mxu0 0.0
  %363 = vmatpush2.msra.mxu0 %v122
  %364 = vmatprep.subr.mxu0 0.0
  %365 = vmatpush2.msra.mxu0 %v121
  %366 = vmatprep.subr.mxu0 0.0
  %367 = vmatpush2.msra.mxu0 %v120
  %368 = vmatprep.subr.mxu0 0.0
  %369 = vmatpush2.msra.mxu0 %v119
  %370 = vmatprep.subr.mxu0 0.0
  %371 = vmatpush2.msra.mxu0 %v118
  %372 = vmatprep.subr.mxu0 0.0
  %373 = vmatpush2.msra.mxu0 %v117
  %374 = vmatprep.subr.mxu0 0.0
  %375 = vmatpush2.msra.mxu0 %v116
  %376 = vmatprep.subr.mxu0 0.0
  %377 = vmatpush2.msra.mxu0 %v115
  %378 = vmatprep.subr.mxu0 0.0
  %379 = vmatpush2.msra.mxu0 %v114
  %380 = vmatprep.subr.mxu0 0.0
  %381 = vmatpush2.msra.mxu0 %v113
  %382 = vmatprep.subr.mxu0 0.0
  %383 = vmatpush2.msra.mxu0 %v112
  %384 = vmatprep.subr.mxu0 0.0
  %385 = vmatpush2.msra.mxu0 %v111
  %386 = vmatprep.subr.mxu0 0.0
  %387 = vmatpush2.msra.mxu0 %v110
  %388 = vmatprep.mubr.f32.mxu0 %v25
  %389 = vmatmul.mubr.f32.gmra.mxu0 %v24
  %v390 = vpop.f32.mrf.mxu0
  %v391 = vadd.f32 %v321, %v390
  %v392 = vpop.f32.mrf.mxu0
  %393 = vdwg.mxu0
  %394 = vmatprep.subr.mxu0 0.0
  %395 = vmatpush1.msra.mxu0 %v141
  %396 = vmatprep.subr.mxu0 0.0
  %397 = vmatpush1.msra.mxu0 %v140
  %398 = vmatprep.subr.mxu0 0.0
  %399 = vmatpush1.msra.mxu0 %v139
  %400 = vmatprep.subr.mxu0 0.0
  %401 = vmatpush1.msra.mxu0 %v138
  %402 = vmatprep.subr.mxu0 0.0
  %403 = vmatpush1.msra.mxu0 %v137
  %404 = vmatprep.subr.mxu0 0.0
  %405 = vmatpush1.msra.mxu0 %v136
  %406 = vmatprep.subr.mxu0 0.0
  %407 = vmatpush1.msra.mxu0 %v135
  %408 = vmatprep.subr.mxu0 0.0
  %409 = vmatpush1.msra.mxu0 %v134
  %410 = vmatprep.subr.mxu0 0.0
  %411 = vmatpush1.msra.mxu0 %v133
  %412 = vmatprep.subr.mxu0 0.0
  %413 = vmatpush1.msra.mxu0 %v132
  %414 = vmatprep.subr.mxu0 0.0
  %415 = vmatpush1.msra.mxu0 %v131
  %416 = vmatprep.subr.mxu0 0.0
  %417 = vmatpush1.msra.mxu0 %v130
  %418 = vmatprep.subr.mxu0 0.0
  %419 = vmatpush1.msra.mxu0 %v129
  %420 = vmatprep.subr.mxu0 0.0
  %421 = vmatpush1.msra.mxu0 %v128
  %422 = vmatprep.subr.mxu0 0.0
  %423 = vmatpush1.msra.mxu0 %v127
  %424 = vmatprep.subr.mxu0 0.0
  %425 = vmatpush1.msra.mxu0 %v126
  %426 = vmatprep.subr.mxu0 0.0
  %427 = vmatpush2.msra.mxu0 %v157
  %428 = vmatprep.subr.mxu0 0.0
  %429 = vmatpush2.msra.mxu0 %v156
  %430 = vmatprep.subr.mxu0 0.0
  %431 = vmatpush2.msra.mxu0 %v155
  %432 = vmatprep.subr.mxu0 0.0
  %433 = vmatpush2.msra.mxu0 %v154
  %434 = vmatprep.subr.mxu0 0.0
  %435 = vmatpush2.msra.mxu0 %v153
  %436 = vmatprep.subr.mxu0 0.0
  %437 = vmatpush2.msra.mxu0 %v152
  %438 = vmatprep.subr.mxu0 0.0
  %439 = vmatpush2.msra.mxu0 %v151
  %440 = vmatprep.subr.mxu0 0.0
  %441 = vmatpush2.msra.mxu0 %v150
  %442 = vmatprep.subr.mxu0 0.0
  %443 = vmatpush2.msra.mxu0 %v149
  %444 = vmatprep.subr.mxu0 0.0
  %445 = vmatpush2.msra.mxu0 %v148
  %446 = vmatprep.subr.mxu0 0.0
  %447 = vmatpush2.msra.mxu0 %v147
  %448 = vmatprep.subr.mxu0 0.0
  %449 = vmatpush2.msra.mxu0 %v146
  %450 = vmatprep.subr.mxu0 0.0
  %451 = vmatpush2.msra.mxu0 %v145
  %452 = vmatprep.subr.mxu0 0.0
  %453 = vmatpush2.msra.mxu0 %v144
  %454 = vmatprep.subr.mxu0 0.0
  %455 = vmatpush2.msra.mxu0 %v143
  %456 = vmatprep.subr.mxu0 0.0
  %457 = vmatpush2.msra.mxu0 %v142
  %458 = vmatprep.mubr.f32.mxu0 %v27
  %459 = vmatmul.mubr.f32.gmra.mxu0 %v26
  %v460 = vpop.f32.mrf.mxu0
  %v461 = vadd.f32 %v391, %v460
  %v462 = vpop.f32.mrf.mxu0
  %463 = vdwg.mxu0
  %464 = vmatprep.subr.mxu0 0.0
  %465 = vmatpush1.msra.mxu0 %v173
  %466 = vmatprep.subr.mxu0 0.0
  %467 = vmatpush1.msra.mxu0 %v172
  %468 = vmatprep.subr.mxu0 0.0
  %469 = vmatpush1.msra.mxu0 %v171
  %470 = vmatprep.subr.mxu0 0.0
  %471 = vmatpush1.msra.mxu0 %v170
  %472 = vmatprep.subr.mxu0 0.0
  %473 = vmatpush1.msra.mxu0 %v169
  %474 = vmatprep.subr.mxu0 0.0
  %475 = vmatpush1.msra.mxu0 %v168
  %476 = vmatprep.subr.mxu0 0.0
  %477 = vmatpush1.msra.mxu0 %v167
  %478 = vmatprep.subr.mxu0 0.0
  %479 = vmatpush1.msra.mxu0 %v166
  %480 = vmatprep.subr.mxu0 0.0
  %481 = vmatpush1.msra.mxu0 %v165
  %482 = vmatprep.subr.mxu0 0.0
  %483 = vmatpush1.msra.mxu0 %v164
  %484 = vmatprep.subr.mxu0 0.0
  %485 = vmatpush1.msra.mxu0 %v163
  %486 = vmatprep.subr.mxu0 0.0
  %487 = vmatpush1.msra.mxu0 %v162
  %488 = vmatprep.subr.mxu0 0.0
  %489 = vmatpush1.msra.mxu0 %v161
  %490 = vmatprep.subr.mxu0 0.0
  %491 = vmatpush1.msra.mxu0 %v160
  %492 = vmatprep.subr.mxu0 0.0
  %493 = vmatpush1.msra.mxu0 %v159
  %494 = vmatprep.subr.mxu0 0.0
  %495 = vmatpush1.msra.mxu0 %v158
  %496 = vmatprep.subr.mxu0 0.0
  %497 = vmatpush2.msra.mxu0 0.0
  %498 = vmatprep.subr.mxu0 0.0
  %499 = vmatpush2.msra.mxu0 0.0
  %500 = vmatprep.subr.mxu0 0.0
  %501 = vmatpush2.msra.mxu0 0.0
  %502 = vmatprep.subr.mxu0 0.0
  %503 = vmatpush2.msra.mxu0 0.0
  %504 = vmatprep.subr.mxu0 0.0
  %505 = vmatpush2.msra.mxu0 0.0
  %506 = vmatprep.subr.mxu0 0.0
  %507 = vmatpush2.msra.mxu0 0.0
  %508 = vmatprep.subr.mxu0 0.0
  %509 = vmatpush2.msra.mxu0 0.0
  %510 = vmatprep.subr.mxu0 0.0
  %511 = vmatpush2.msra.mxu0 0.0
  %512 = vmatprep.subr.mxu0 0.0
  %513 = vmatpush2.msra.mxu0 0.0
  %514 = vmatprep.subr.mxu0 0.0
  %515 = vmatpush2.msra.mxu0 0.0
  %516 = vmatprep.subr.mxu0 0.0
  %517 = vmatpush2.msra.mxu0 %v179
  %518 = vmatprep.subr.mxu0 0.0
  %519 = vmatpush2.msra.mxu0 %v178
  %520 = vmatprep.subr.mxu0 0.0
  %521 = vmatpush2.msra.mxu0 %v177
  %522 = vmatprep.subr.mxu0 0.0
  %523 = vmatpush2.msra.mxu0 %v176
  %524 = vmatprep.subr.mxu0 0.0
  %525 = vmatpush2.msra.mxu0 %v175
  %526 = vmatprep.subr.mxu0 0.0
  %527 = vmatpush2.msra.mxu0 %v174
  %528 = vmatprep.mubr.f32.mxu0 %v182
  %529 = vmatmul.mubr.f32.gmra.mxu0 %v28
  %v530 = vpop.f32.mrf.mxu0
  %v531 = vadd.f32 %v461, %v530
  %v532 = vpop.f32.mrf.mxu0
  %533 = vdwg.mxu0
  %v534 = vld [vmem:[%s2] sm:$0xff]
  %v535 = vld [vmem:[%s2 + $0x8] sm:$0xff]
  %v536 = vld [vmem:[%s2 + $0x10] sm:$0xff]
  %v537 = vld [vmem:[%s2 + $0x18] sm:$0xff]
  %v538 = vld [vmem:[%s2 + $0x20] sm:$0xff]
  %v539 = vld [vmem:[%s2 + $0x28] sm:$0xff]
  %v540 = vld [vmem:[%s2 + $0x30] sm:$0xff]
  %v541 = vld [vmem:[%s2 + $0x38] sm:$0xff]
  %v542 = vld [vmem:[%s2 + $0x40] sm:$0xff]
  %v543 = vld [vmem:[%s2 + $0x48] sm:$0xff]
  %v544 = vld [vmem:[%s2 + $0x50] sm:$0xff]
  %v545 = vld [vmem:[%s2 + $0x58] sm:$0xff]
  %v546 = vld [vmem:[%s2 + $0x60] sm:$0xff]
  %v547 = vld [vmem:[%s2 + $0x68] sm:$0xff]
  %v548 = vld [vmem:[%s2 + $0x70] sm:$0xff]
  %v549 = vld [vmem:[%s2 + $0x78] sm:$0xff]
  %v550 = vld [vmem:[%s2 + $0x80] sm:$0xff]
  %v551 = vld [vmem:[%s2 + $0x88] sm:$0xff]
  %v552 = vld [vmem:[%s2 + $0x90] sm:$0xff]
  %v553 = vld [vmem:[%s2 + $0x98] sm:$0xff]
  %v554 = vld [vmem:[%s2 + $0xa0] sm:$0xff]
  %v555 = vld [vmem:[%s2 + $0xa8] sm:$0xff]
  %v556 = vld [vmem:[%s2 + $0xb0] sm:$0xff]
  %v557 = vld [vmem:[%s2 + $0xb8] sm:$0xff]
  %v558 = vld [vmem:[%s2 + $0xc0] sm:$0xff]
  %v559 = vld [vmem:[%s2 + $0xc8] sm:$0xff]
  %v560 = vld [vmem:[%s2 + $0xd0] sm:$0xff]
  %v561 = vld [vmem:[%s2 + $0xd8] sm:$0xff]
  %v562 = vld [vmem:[%s2 + $0xe0] sm:$0xff]
  %v563 = vld [vmem:[%s2 + $0xe8] sm:$0xff]
  %v564 = vld [vmem:[%s2 + $0xf0] sm:$0xff]
  %v565 = vld [vmem:[%s2 + $0xf8] sm:$0xff]
  %v566 = vld [vmem:[%s2 + $0x100] sm:$0xff]
  %v567 = vld [vmem:[%s2 + $0x108] sm:$0xff]
  %v568 = vld [vmem:[%s2 + $0x110] sm:$0xff]
  %v569 = vld [vmem:[%s2 + $0x118] sm:$0xff]
  %v570 = vld [vmem:[%s2 + $0x120] sm:$0xff]
  %v571 = vld [vmem:[%s2 + $0x128] sm:$0xff]
  %v572 = vld [vmem:[%s2 + $0x130] sm:$0xff]
  %v573 = vld [vmem:[%s2 + $0x138] sm:$0xff]
  %v574 = vld [vmem:[%s2 + $0x140] sm:$0xff]
  %v575 = vld [vmem:[%s2 + $0x148] sm:$0xff]
  %v576 = vld [vmem:[%s2 + $0x150] sm:$0xff]
  %v577 = vld [vmem:[%s2 + $0x158] sm:$0xff]
  %v578 = vld [vmem:[%s2 + $0x160] sm:$0xff]
  %v579 = vld [vmem:[%s2 + $0x168] sm:$0xff]
  %v580 = vld [vmem:[%s2 + $0x170] sm:$0xff]
  %v581 = vld [vmem:[%s2 + $0x178] sm:$0xff]
  %v582 = vld [vmem:[%s2 + $0x180] sm:$0xff]
  %v583 = vld [vmem:[%s2 + $0x188] sm:$0xff]
  %v584 = vld [vmem:[%s2 + $0x190] sm:$0xff]
  %v585 = vld [vmem:[%s2 + $0x198] sm:$0xff]
  %v586 = vld [vmem:[%s2 + $0x1a0] sm:$0xff]
  %v587 = vld [vmem:[%s2 + $0x1a8] sm:$0xff]
  %v588 = vld [vmem:[%s2 + $0x1b0] sm:$0xff]
  %v589 = vld [vmem:[%s2 + $0x1b8] sm:$0xff]
  %v590 = vld [vmem:[%s2 + $0x1c0] sm:$0xff]
  %v591 = vld [vmem:[%s2 + $0x1c8] sm:$0xff]
  %v592 = vld [vmem:[%s2 + $0x1d0] sm:$0xff]
  %v593 = vld [vmem:[%s2 + $0x1d8] sm:$0xff]
  %v594 = vld [vmem:[%s2 + $0x1e0] sm:$0xff]
  %v595 = vld [vmem:[%s2 + $0x1e8] sm:$0xff]
  %v596 = vld [vmem:[%s2 + $0x1f0] sm:$0xff]
  %v597 = vld [vmem:[%s2 + $0x1f8] sm:$0xff]
  %v598 = vld [vmem:[%s2 + $0x200] sm:$0xff]
  %v599 = vld [vmem:[%s2 + $0x208] sm:$0xff]
  %v600 = vld [vmem:[%s2 + $0x210] sm:$0xff]
  %v601 = vld [vmem:[%s2 + $0x218] sm:$0xff]
  %v602 = vld [vmem:[%s2 + $0x220] sm:$0xff]
  %v603 = vld [vmem:[%s2 + $0x228] sm:$0xff]
  %v604 = vld [vmem:[%s2 + $0x230] sm:$0xff]
  %v605 = vld [vmem:[%s2 + $0x238] sm:$0xff]
  %v606 = vld [vmem:[%s2 + $0x240] sm:$0xff]
  %v607 = vld [vmem:[%s2 + $0x248] sm:$0xff]
  %v608 = vld [vmem:[%s2 + $0x250] sm:$0xff]
  %v609 = vld [vmem:[%s2 + $0x258] sm:$0xff]
  %v610 = vld [vmem:[%s2 + $0x260] sm:$0xff]
  %v611 = vld [vmem:[%s2 + $0x268] sm:$0xff]
  %v612 = vld [vmem:[%s2 + $0x270] sm:$0xff]
  %v613 = vld [vmem:[%s2 + $0x278] sm:$0xff]
  %v614 = vld [vmem:[%s2 + $0x280] sm:$0xff]
  %v615 = vld [vmem:[%s2 + $0x288] sm:$0xff]
  %v616 = vld [vmem:[%s2 + $0x290] sm:$0xff]
  %v617 = vld [vmem:[%s2 + $0x298] sm:$0xff]
  %v618 = vld [vmem:[%s2 + $0x2a0] sm:$0xff]
  %v619 = vld [vmem:[%s2 + $0x2a8] sm:$0xff]
  %v620 = vld [vmem:[%s2 + $0x2b0] sm:$0xff]
  %v621 = vld [vmem:[%s2 + $0x2b8] sm:$0xff]
  %v622 = vld [vmem:[%s2 + $0x2c0] sm:$0xff]
  %v623 = vld [vmem:[%s2 + $0x2c8] sm:$0xff]
  %v624 = vld [vmem:[%s2 + $0x2d0] sm:$0xff]
  %v625 = vld [vmem:[%s2 + $0x2d8] sm:$0xff]
  %v626 = vld [vmem:[%s2 + $0x2e0] sm:$0xff]
  %v627 = vld [vmem:[%s2 + $0x2e8] sm:$0xff]
  %v628 = vld [vmem:[%s2 + $0x2f0] sm:$0xff]
  %v629 = vld [vmem:[%s2 + $0x2f8] sm:$0xff]
  %v630 = vld [vmem:[%s2 + $0x300] sm:$0xff]
  %v631 = vld [vmem:[%s2 + $0x308] sm:$0xff]
  %v632 = vld [vmem:[%s2 + $0x310] sm:$0xff]
  %v633 = vld [vmem:[%s2 + $0x318] sm:$0xff]
  %v634 = vld [vmem:[%s2 + $0x320] sm:$0xff]
  %v635 = vld [vmem:[%s2 + $0x328] sm:$0xff]
  %v636 = vld [vmem:[%s2 + $0x330] sm:$0xff]
  %v637 = vld [vmem:[%s2 + $0x338] sm:$0xff]
  %v638 = vld [vmem:[%s2 + $0x340] sm:$0xff]
  %v639 = vld [vmem:[%s2 + $0x348] sm:$0xff]
  %v640 = vld [vmem:[%s2 + $0x350] sm:$0xff]
  %v641 = vld [vmem:[%s2 + $0x358] sm:$0xff]
  %v642 = vld [vmem:[%s2 + $0x360] sm:$0xff]
  %v643 = vld [vmem:[%s2 + $0x368] sm:$0xff]
  %v644 = vld [vmem:[%s2 + $0x370] sm:$0xff]
  %v645 = vld [vmem:[%s2 + $0x378] sm:$0xff]
  %v646 = vld [vmem:[%s2 + $0x380] sm:$0xff]
  %v647 = vld [vmem:[%s2 + $0x388] sm:$0xff]
  %v648 = vld [vmem:[%s2 + $0x390] sm:$0xff]
  %v649 = vld [vmem:[%s2 + $0x398] sm:$0xff]
  %v650 = vld [vmem:[%s2 + $0x3a0] sm:$0xff]
  %v651 = vld [vmem:[%s2 + $0x3a8] sm:$0xff]
  %v652 = vld [vmem:[%s2 + $0x3b0] sm:$0xff]
  %v653 = vld [vmem:[%s2 + $0x3b8] sm:$0xff]
  %v654 = vld [vmem:[%s2 + $0x3c0] sm:$0xff]
  %v655 = vld [vmem:[%s2 + $0x3c8] sm:$0xff]
  %v656 = vld [vmem:[%s2 + $0x3d0] sm:$0xff]
  %v657 = vld [vmem:[%s2 + $0x3d8] sm:$0xff]
  %v658 = vld [vmem:[%s2 + $0x3e0] sm:$0xff]
  %v659 = vld [vmem:[%s2 + $0x3e8] sm:$0xff]
  %v660 = vld [vmem:[%s2 + $0x3f0] sm:$0xff]
  %v661 = vld [vmem:[%s2 + $0x3f8] sm:$0xff]
  %v662 = vld [vmem:[%s2 + $0x400] sm:$0xff]
  %v663 = vld [vmem:[%s2 + $0x408] sm:$0xff]
  %v664 = vld [vmem:[%s2 + $0x410] sm:$0xff]
  %v665 = vld [vmem:[%s2 + $0x418] sm:$0xff]
  %v666 = vld [vmem:[%s2 + $0x420] sm:$0xff]
  %v667 = vld [vmem:[%s2 + $0x428] sm:$0xff]
  %v668 = vld [vmem:[%s2 + $0x430] sm:$0xff]
  %v669 = vld [vmem:[%s2 + $0x438] sm:$0xff]
  %v670 = vld [vmem:[%s2 + $0x440] sm:$0xff]
  %v671 = vld [vmem:[%s2 + $0x448] sm:$0xff]
  %v672 = vld [vmem:[%s2 + $0x450] sm:$0xff]
  %v673 = vld [vmem:[%s2 + $0x458] sm:$0xff]
  %v674 = vld [vmem:[%s2 + $0x460] sm:$0xff]
  %v675 = vld [vmem:[%s2 + $0x468] sm:$0xff]
  %v676 = vld [vmem:[%s2 + $0x470] sm:$0xff]
  %v677 = vld [vmem:[%s2 + $0x478] sm:$0xff]
  %v678 = vld [vmem:[%s2 + $0x480] sm:$0xff]
  %v679 = vld [vmem:[%s2 + $0x488] sm:$0xff]
  %v680 = vld [vmem:[%s2 + $0x490] sm:$0xff]
  %v681 = vld [vmem:[%s2 + $0x498] sm:$0xff]
  %v682 = vld [vmem:[%s2 + $0x4a0] sm:$0xff]
  %v683 = vld [vmem:[%s2 + $0x4a8] sm:$0xff]
  %684 = vmatprep.subr.mxu0 0.0
  %685 = vmatpush1.msra.mxu0 %v549
  %686 = vmatprep.subr.mxu0 0.0
  %687 = vmatpush1.msra.mxu0 %v548
  %688 = vmatprep.subr.mxu0 0.0
  %689 = vmatpush1.msra.mxu0 %v547
  %690 = vmatprep.subr.mxu0 0.0
  %691 = vmatpush1.msra.mxu0 %v546
  %692 = vmatprep.subr.mxu0 0.0
  %693 = vmatpush1.msra.mxu0 %v545
  %694 = vmatprep.subr.mxu0 0.0
  %695 = vmatpush1.msra.mxu0 %v544
  %696 = vmatprep.subr.mxu0 0.0
  %697 = vmatpush1.msra.mxu0 %v543
  %698 = vmatprep.subr.mxu0 0.0
  %699 = vmatpush1.msra.mxu0 %v542
  %700 = vmatprep.subr.mxu0 0.0
  %701 = vmatpush1.msra.mxu0 %v541
  %702 = vmatprep.subr.mxu0 0.0
  %703 = vmatpush1.msra.mxu0 %v540
  %704 = vmatprep.subr.mxu0 0.0
  %705 = vmatpush1.msra.mxu0 %v539
  %706 = vmatprep.subr.mxu0 0.0
  %707 = vmatpush1.msra.mxu0 %v538
  %708 = vmatprep.subr.mxu0 0.0
  %709 = vmatpush1.msra.mxu0 %v537
  %710 = vmatprep.subr.mxu0 0.0
  %711 = vmatpush1.msra.mxu0 %v536
  %712 = vmatprep.subr.mxu0 0.0
  %713 = vmatpush1.msra.mxu0 %v535
  %714 = vmatprep.subr.mxu0 0.0
  %715 = vmatpush1.msra.mxu0 %v534
  %716 = vmatprep.subr.mxu0 0.0
  %717 = vmatpush2.msra.mxu0 %v565
  %718 = vmatprep.subr.mxu0 0.0
  %719 = vmatpush2.msra.mxu0 %v564
  %720 = vmatprep.subr.mxu0 0.0
  %721 = vmatpush2.msra.mxu0 %v563
  %722 = vmatprep.subr.mxu0 0.0
  %723 = vmatpush2.msra.mxu0 %v562
  %724 = vmatprep.subr.mxu0 0.0
  %725 = vmatpush2.msra.mxu0 %v561
  %726 = vmatprep.subr.mxu0 0.0
  %727 = vmatpush2.msra.mxu0 %v560
  %728 = vmatprep.subr.mxu0 0.0
  %729 = vmatpush2.msra.mxu0 %v559
  %730 = vmatprep.subr.mxu0 0.0
  %731 = vmatpush2.msra.mxu0 %v558
  %732 = vmatprep.subr.mxu0 0.0
  %733 = vmatpush2.msra.mxu0 %v557
  %734 = vmatprep.subr.mxu0 0.0
  %735 = vmatpush2.msra.mxu0 %v556
  %736 = vmatprep.subr.mxu0 0.0
  %737 = vmatpush2.msra.mxu0 %v555
  %738 = vmatprep.subr.mxu0 0.0
  %739 = vmatpush2.msra.mxu0 %v554
  %740 = vmatprep.subr.mxu0 0.0
  %741 = vmatpush2.msra.mxu0 %v553
  %742 = vmatprep.subr.mxu0 0.0
  %743 = vmatpush2.msra.mxu0 %v552
  %744 = vmatprep.subr.mxu0 0.0
  %745 = vmatpush2.msra.mxu0 %v551
  %746 = vmatprep.subr.mxu0 0.0
  %747 = vmatpush2.msra.mxu0 %v550
  %748 = vmatprep.mubr.f32.mxu0 %v21
  %749 = vmatmul.mubr.f32.gmra.mxu0 %v20
  %v750 = vpop.f32.mrf.mxu0
  %v751 = vadd.f32 0.0, %v750
  %v752 = vpop.f32.mrf.mxu0
  %753 = vdwg.mxu0
  %754 = vmatprep.subr.mxu0 0.0
  %755 = vmatpush1.msra.mxu0 %v581
  %756 = vmatprep.subr.mxu0 0.0
  %757 = vmatpush1.msra.mxu0 %v580
  %758 = vmatprep.subr.mxu0 0.0
  %759 = vmatpush1.msra.mxu0 %v579
  %760 = vmatprep.subr.mxu0 0.0
  %761 = vmatpush1.msra.mxu0 %v578
  %762 = vmatprep.subr.mxu0 0.0
  %763 = vmatpush1.msra.mxu0 %v577
  %764 = vmatprep.subr.mxu0 0.0
  %765 = vmatpush1.msra.mxu0 %v576
  %766 = vmatprep.subr.mxu0 0.0
  %767 = vmatpush1.msra.mxu0 %v575
  %768 = vmatprep.subr.mxu0 0.0
  %769 = vmatpush1.msra.mxu0 %v574
  %770 = vmatprep.subr.mxu0 0.0
  %771 = vmatpush1.msra.mxu0 %v573
  %772 = vmatprep.subr.mxu0 0.0
  %773 = vmatpush1.msra.mxu0 %v572
  %774 = vmatprep.subr.mxu0 0.0
  %775 = vmatpush1.msra.mxu0 %v571
  %776 = vmatprep.subr.mxu0 0.0
  %777 = vmatpush1.msra.mxu0 %v570
  %778 = vmatprep.subr.mxu0 0.0
  %779 = vmatpush1.msra.mxu0 %v569
  %780 = vmatprep.subr.mxu0 0.0
  %781 = vmatpush1.msra.mxu0 %v568
  %782 = vmatprep.subr.mxu0 0.0
  %783 = vmatpush1.msra.mxu0 %v567
  %784 = vmatprep.subr.mxu0 0.0
  %785 = vmatpush1.msra.mxu0 %v566
  %786 = vmatprep.subr.mxu0 0.0
  %787 = vmatpush2.msra.mxu0 %v597
  %788 = vmatprep.subr.mxu0 0.0
  %789 = vmatpush2.msra.mxu0 %v596
  %790 = vmatprep.subr.mxu0 0.0
  %791 = vmatpush2.msra.mxu0 %v595
  %792 = vmatprep.subr.mxu0 0.0
  %793 = vmatpush2.msra.mxu0 %v594
  %794 = vmatprep.subr.mxu0 0.0
  %795 = vmatpush2.msra.mxu0 %v593
  %796 = vmatprep.subr.mxu0 0.0
  %797 = vmatpush2.msra.mxu0 %v592
  %798 = vmatprep.subr.mxu0 0.0
  %799 = vmatpush2.msra.mxu0 %v591
  %800 = vmatprep.subr.mxu0 0.0
  %801 = vmatpush2.msra.mxu0 %v590
  %802 = vmatprep.subr.mxu0 0.0
  %803 = vmatpush2.msra.mxu0 %v589
  %804 = vmatprep.subr.mxu0 0.0
  %805 = vmatpush2.msra.mxu0 %v588
  %806 = vmatprep.subr.mxu0 0.0
  %807 = vmatpush2.msra.mxu0 %v587
  %808 = vmatprep.subr.mxu0 0.0
  %809 = vmatpush2.msra.mxu0 %v586
  %810 = vmatprep.subr.mxu0 0.0
  %811 = vmatpush2.msra.mxu0 %v585
  %812 = vmatprep.subr.mxu0 0.0
  %813 = vmatpush2.msra.mxu0 %v584
  %814 = vmatprep.subr.mxu0 0.0
  %815 = vmatpush2.msra.mxu0 %v583
  %816 = vmatprep.subr.mxu0 0.0
  %817 = vmatpush2.msra.mxu0 %v582
  %818 = vmatprep.mubr.f32.mxu0 %v23
  %819 = vmatmul.mubr.f32.gmra.mxu0 %v22
  %v820 = vpop.f32.mrf.mxu0
  %v821 = vadd.f32 %v751, %v820
  %v822 = vpop.f32.mrf.mxu0
  %823 = vdwg.mxu0
  %824 = vmatprep.subr.mxu0 0.0
  %825 = vmatpush1.msra.mxu0 %v613
  %826 = vmatprep.subr.mxu0 0.0
  %827 = vmatpush1.msra.mxu0 %v612
  %828 = vmatprep.subr.mxu0 0.0
  %829 = vmatpush1.msra.mxu0 %v611
  %830 = vmatprep.subr.mxu0 0.0
  %831 = vmatpush1.msra.mxu0 %v610
  %832 = vmatprep.subr.mxu0 0.0
  %833 = vmatpush1.msra.mxu0 %v609
  %834 = vmatprep.subr.mxu0 0.0
  %835 = vmatpush1.msra.mxu0 %v608
  %836 = vmatprep.subr.mxu0 0.0
  %837 = vmatpush1.msra.mxu0 %v607
  %838 = vmatprep.subr.mxu0 0.0
  %839 = vmatpush1.msra.mxu0 %v606
  %840 = vmatprep.subr.mxu0 0.0
  %841 = vmatpush1.msra.mxu0 %v605
  %842 = vmatprep.subr.mxu0 0.0
  %843 = vmatpush1.msra.mxu0 %v604
  %844 = vmatprep.subr.mxu0 0.0
  %845 = vmatpush1.msra.mxu0 %v603
  %846 = vmatprep.subr.mxu0 0.0
  %847 = vmatpush1.msra.mxu0 %v602
  %848 = vmatprep.subr.mxu0 0.0
  %849 = vmatpush1.msra.mxu0 %v601
  %850 = vmatprep.subr.mxu0 0.0
  %851 = vmatpush1.msra.mxu0 %v600
  %852 = vmatprep.subr.mxu0 0.0
  %853 = vmatpush1.msra.mxu0 %v599
  %854 = vmatprep.subr.mxu0 0.0
  %855 = vmatpush1.msra.mxu0 %v598
  %856 = vmatprep.subr.mxu0 0.0
  %857 = vmatpush2.msra.mxu0 %v629
  %858 = vmatprep.subr.mxu0 0.0
  %859 = vmatpush2.msra.mxu0 %v628
  %860 = vmatprep.subr.mxu0 0.0
  %861 = vmatpush2.msra.mxu0 %v627
  %862 = vmatprep.subr.mxu0 0.0
  %863 = vmatpush2.msra.mxu0 %v626
  %864 = vmatprep.subr.mxu0 0.0
  %865 = vmatpush2.msra.mxu0 %v625
  %866 = vmatprep.subr.mxu0 0.0
  %867 = vmatpush2.msra.mxu0 %v624
  %868 = vmatprep.subr.mxu0 0.0
  %869 = vmatpush2.msra.mxu0 %v623
  %870 = vmatprep.subr.mxu0 0.0
  %871 = vmatpush2.msra.mxu0 %v622
  %872 = vmatprep.subr.mxu0 0.0
  %873 = vmatpush2.msra.mxu0 %v621
  %874 = vmatprep.subr.mxu0 0.0
  %875 = vmatpush2.msra.mxu0 %v620
  %876 = vmatprep.subr.mxu0 0.0
  %877 = vmatpush2.msra.mxu0 %v619
  %878 = vmatprep.subr.mxu0 0.0
  %879 = vmatpush2.msra.mxu0 %v618
  %880 = vmatprep.subr.mxu0 0.0
  %881 = vmatpush2.msra.mxu0 %v617
  %882 = vmatprep.subr.mxu0 0.0
  %883 = vmatpush2.msra.mxu0 %v616
  %884 = vmatprep.subr.mxu0 0.0
  %885 = vmatpush2.msra.mxu0 %v615
  %886 = vmatprep.subr.mxu0 0.0
  %887 = vmatpush2.msra.mxu0 %v614
  %888 = vmatprep.mubr.f32.mxu0 %v25
  %889 = vmatmul.mubr.f32.gmra.mxu0 %v24
  %v890 = vpop.f32.mrf.mxu0
  %v891 = vadd.f32 %v821, %v890
  %v892 = vpop.f32.mrf.mxu0
  %893 = vdwg.mxu0
  %894 = vmatprep.subr.mxu0 0.0
  %895 = vmatpush1.msra.mxu0 %v645
  %896 = vmatprep.subr.mxu0 0.0
  %897 = vmatpush1.msra.mxu0 %v644
  %898 = vmatprep.subr.mxu0 0.0
  %899 = vmatpush1.msra.mxu0 %v643
  %900 = vmatprep.subr.mxu0 0.0
  %901 = vmatpush1.msra.mxu0 %v642
  %902 = vmatprep.subr.mxu0 0.0
  %903 = vmatpush1.msra.mxu0 %v641
  %904 = vmatprep.subr.mxu0 0.0
  %905 = vmatpush1.msra.mxu0 %v640
  %906 = vmatprep.subr.mxu0 0.0
  %907 = vmatpush1.msra.mxu0 %v639
  %908 = vmatprep.subr.mxu0 0.0
  %909 = vmatpush1.msra.mxu0 %v638
  %910 = vmatprep.subr.mxu0 0.0
  %911 = vmatpush1.msra.mxu0 %v637
  %912 = vmatprep.subr.mxu0 0.0
  %913 = vmatpush1.msra.mxu0 %v636
  %914 = vmatprep.subr.mxu0 0.0
  %915 = vmatpush1.msra.mxu0 %v635
  %916 = vmatprep.subr.mxu0 0.0
  %917 = vmatpush1.msra.mxu0 %v634
  %918 = vmatprep.subr.mxu0 0.0
  %919 = vmatpush1.msra.mxu0 %v633
  %920 = vmatprep.subr.mxu0 0.0
  %921 = vmatpush1.msra.mxu0 %v632
  %922 = vmatprep.subr.mxu0 0.0
  %923 = vmatpush1.msra.mxu0 %v631
  %924 = vmatprep.subr.mxu0 0.0
  %925 = vmatpush1.msra.mxu0 %v630
  %926 = vmatprep.subr.mxu0 0.0
  %927 = vmatpush2.msra.mxu0 %v661
  %928 = vmatprep.subr.mxu0 0.0
  %929 = vmatpush2.msra.mxu0 %v660
  %930 = vmatprep.subr.mxu0 0.0
  %931 = vmatpush2.msra.mxu0 %v659
  %932 = vmatprep.subr.mxu0 0.0
  %933 = vmatpush2.msra.mxu0 %v658
  %934 = vmatprep.subr.mxu0 0.0
  %935 = vmatpush2.msra.mxu0 %v657
  %936 = vmatprep.subr.mxu0 0.0
  %937 = vmatpush2.msra.mxu0 %v656
  %938 = vmatprep.subr.mxu0 0.0
  %939 = vmatpush2.msra.mxu0 %v655
  %940 = vmatprep.subr.mxu0 0.0
  %941 = vmatpush2.msra.mxu0 %v654
  %942 = vmatprep.subr.mxu0 0.0
  %943 = vmatpush2.msra.mxu0 %v653
  %944 = vmatprep.subr.mxu0 0.0
  %945 = vmatpush2.msra.mxu0 %v652
  %946 = vmatprep.subr.mxu0 0.0
  %947 = vmatpush2.msra.mxu0 %v651
  %948 = vmatprep.subr.mxu0 0.0
  %949 = vmatpush2.msra.mxu0 %v650
  %950 = vmatprep.subr.mxu0 0.0
  %951 = vmatpush2.msra.mxu0 %v649
  %952 = vmatprep.subr.mxu0 0.0
  %953 = vmatpush2.msra.mxu0 %v648
  %954 = vmatprep.subr.mxu0 0.0
  %955 = vmatpush2.msra.mxu0 %v647
  %956 = vmatprep.subr.mxu0 0.0
  %957 = vmatpush2.msra.mxu0 %v646
  %958 = vmatprep.mubr.f32.mxu0 %v27
  %959 = vmatmul.mubr.f32.gmra.mxu0 %v26
  %v960 = vpop.f32.mrf.mxu0
  %v961 = vadd.f32 %v891, %v960
  %v962 = vpop.f32.mrf.mxu0
  %963 = vdwg.mxu0
  %964 = vmatprep.subr.mxu0 0.0
  %965 = vmatpush1.msra.mxu0 %v677
  %966 = vmatprep.subr.mxu0 0.0
  %967 = vmatpush1.msra.mxu0 %v676
  %968 = vmatprep.subr.mxu0 0.0
  %969 = vmatpush1.msra.mxu0 %v675
  %970 = vmatprep.subr.mxu0 0.0
  %971 = vmatpush1.msra.mxu0 %v674
  %972 = vmatprep.subr.mxu0 0.0
  %973 = vmatpush1.msra.mxu0 %v673
  %974 = vmatprep.subr.mxu0 0.0
  %975 = vmatpush1.msra.mxu0 %v672
  %976 = vmatprep.subr.mxu0 0.0
  %977 = vmatpush1.msra.mxu0 %v671
  %978 = vmatprep.subr.mxu0 0.0
  %979 = vmatpush1.msra.mxu0 %v670
  %980 = vmatprep.subr.mxu0 0.0
  %981 = vmatpush1.msra.mxu0 %v669
  %982 = vmatprep.subr.mxu0 0.0
  %983 = vmatpush1.msra.mxu0 %v668
  %984 = vmatprep.subr.mxu0 0.0
  %985 = vmatpush1.msra.mxu0 %v667
  %986 = vmatprep.subr.mxu0 0.0
  %987 = vmatpush1.msra.mxu0 %v666
  %988 = vmatprep.subr.mxu0 0.0
  %989 = vmatpush1.msra.mxu0 %v665
  %990 = vmatprep.subr.mxu0 0.0
  %991 = vmatpush1.msra.mxu0 %v664
  %992 = vmatprep.subr.mxu0 0.0
  %993 = vmatpush1.msra.mxu0 %v663
  %994 = vmatprep.subr.mxu0 0.0
  %995 = vmatpush1.msra.mxu0 %v662
  %996 = vmatprep.subr.mxu0 0.0
  %997 = vmatpush2.msra.mxu0 0.0
  %998 = vmatprep.subr.mxu0 0.0
  %999 = vmatpush2.msra.mxu0 0.0
  %1000 = vmatprep.subr.mxu0 0.0
  %1001 = vmatpush2.msra.mxu0 0.0
  %1002 = vmatprep.subr.mxu0 0.0
  %1003 = vmatpush2.msra.mxu0 0.0
  %1004 = vmatprep.subr.mxu0 0.0
  %1005 = vmatpush2.msra.mxu0 0.0
  %1006 = vmatprep.subr.mxu0 0.0
  %1007 = vmatpush2.msra.mxu0 0.0
  %1008 = vmatprep.subr.mxu0 0.0
  %1009 = vmatpush2.msra.mxu0 0.0
  %1010 = vmatprep.subr.mxu0 0.0
  %1011 = vmatpush2.msra.mxu0 0.0
  %1012 = vmatprep.subr.mxu0 0.0
  %1013 = vmatpush2.msra.mxu0 0.0
  %1014 = vmatprep.subr.mxu0 0.0
  %1015 = vmatpush2.msra.mxu0 0.0
  %1016 = vmatprep.subr.mxu0 0.0
  %1017 = vmatpush2.msra.mxu0 %v683
  %1018 = vmatprep.subr.mxu0 0.0
  %1019 = vmatpush2.msra.mxu0 %v682
  %1020 = vmatprep.subr.mxu0 0.0
  %1021 = vmatpush2.msra.mxu0 %v681
  %1022 = vmatprep.subr.mxu0 0.0
  %1023 = vmatpush2.msra.mxu0 %v680
  %1024 = vmatprep.subr.mxu0 0.0
  %1025 = vmatpush2.msra.mxu0 %v679
  %1026 = vmatprep.subr.mxu0 0.0
  %1027 = vmatpush2.msra.mxu0 %v678
  %1028 = vmatprep.mubr.f32.mxu0 %v182
  %1029 = vmatmul.mubr.f32.gmra.mxu0 %v28
  %v1030 = vpop.f32.mrf.mxu0
  %v1031 = vadd.f32 %v961, %v1030
  %v1032 = vpop.f32.mrf.mxu0
  %1033 = vdwg.mxu0
  %v1034 = vmax.f32 %v531, %v1031
  %v1035 = vld [vmem:[%s3] sm:$0xff]
  %v1036 = vld [vmem:[%s3 + $0x8] sm:$0xff]
  %v1037 = vld [vmem:[%s3 + $0x10] sm:$0xff]
  %v1038 = vld [vmem:[%s3 + $0x18] sm:$0xff]
  %v1039 = vld [vmem:[%s3 + $0x20] sm:$0xff]
  %v1040 = vld [vmem:[%s3 + $0x28] sm:$0xff]
  %v1041 = vld [vmem:[%s3 + $0x30] sm:$0xff]
  %v1042 = vld [vmem:[%s3 + $0x38] sm:$0xff]
  %v1043 = vld [vmem:[%s3 + $0x40] sm:$0xff]
  %v1044 = vld [vmem:[%s3 + $0x48] sm:$0x7]
  %v1045 = vld [vmem:[%s4] sm:$0x1]
  %v1047 = vlaneseq
  %v1048 = vshrl.u32 %v1047, 7
  %v1049 = vsub.s32 0, %v1048
  %v1050 = vrot.slane %v1045, %v1049
  %vm1052 = vcmask 613376
  %v1054 = vsel %vm1052, %v1034, 0
  %vm1056 = vcmask 1042432
  %v1058 = vsel %vm1056, %v1044, 0
  %1060 = vmatprep.subr.mxu0 0.0
  %1061 = vmatpush1.msra.mxu0 0.0
  %1062 = vmatprep.subr.mxu0 0.0
  %1063 = vmatpush1.msra.mxu0 0.0
  %1064 = vmatprep.subr.mxu0 0.0
  %1065 = vmatpush1.msra.mxu0 0.0
  %1066 = vmatprep.subr.mxu0 0.0
  %1067 = vmatpush1.msra.mxu0 0.0
  %1068 = vmatprep.subr.mxu0 0.0
  %1069 = vmatpush1.msra.mxu0 0.0
  %1070 = vmatprep.subr.mxu0 0.0
  %1071 = vmatpush1.msra.mxu0 0.0
  %1072 = vmatprep.subr.mxu0 0.0
  %1073 = vmatpush1.msra.mxu0 %v1058
  %1074 = vmatprep.subr.mxu0 0.0
  %1075 = vmatpush1.msra.mxu0 %v1043
  %1076 = vmatprep.subr.mxu0 0.0
  %1077 = vmatpush1.msra.mxu0 %v1042
  %1078 = vmatprep.subr.mxu0 0.0
  %1079 = vmatpush1.msra.mxu0 %v1041
  %1080 = vmatprep.subr.mxu0 0.0
  %1081 = vmatpush1.msra.mxu0 %v1040
  %1082 = vmatprep.subr.mxu0 0.0
  %1083 = vmatpush1.msra.mxu0 %v1039
  %1084 = vmatprep.subr.mxu0 0.0
  %1085 = vmatpush1.msra.mxu0 %v1038
  %1086 = vmatprep.subr.mxu0 0.0
  %1087 = vmatpush1.msra.mxu0 %v1037
  %1088 = vmatprep.subr.mxu0 0.0
  %1089 = vmatpush1.msra.mxu0 %v1036
  %1090 = vmatprep.subr.mxu0 0.0
  %1091 = vmatpush1.msra.mxu0 %v1035
  %1092 = vmatprep.subr.mxu0 0.0
  %1093 = vmatpush2.msra.mxu0 0.0
  %1094 = vmatprep.subr.mxu0 0.0
  %1095 = vmatpush2.msra.mxu0 0.0
  %1096 = vmatprep.subr.mxu0 0.0
  %1097 = vmatpush2.msra.mxu0 0.0
  %1098 = vmatprep.subr.mxu0 0.0
  %1099 = vmatpush2.msra.mxu0 0.0
  %1100 = vmatprep.subr.mxu0 0.0
  %1101 = vmatpush2.msra.mxu0 0.0
  %1102 = vmatprep.subr.mxu0 0.0
  %1103 = vmatpush2.msra.mxu0 0.0
  %1104 = vmatprep.subr.mxu0 0.0
  %1105 = vmatpush2.msra.mxu0 0.0
  %1106 = vmatprep.subr.mxu0 0.0
  %1107 = vmatpush2.msra.mxu0 0.0
  %1108 = vmatprep.subr.mxu0 0.0
  %1109 = vmatpush2.msra.mxu0 0.0
  %1110 = vmatprep.subr.mxu0 0.0
  %1111 = vmatpush2.msra.mxu0 0.0
  %1112 = vmatprep.subr.mxu0 0.0
  %1113 = vmatpush2.msra.mxu0 0.0
  %1114 = vmatprep.subr.mxu0 0.0
  %1115 = vmatpush2.msra.mxu0 0.0
  %1116 = vmatprep.subr.mxu0 0.0
  %1117 = vmatpush2.msra.mxu0 0.0
  %1118 = vmatprep.subr.mxu0 0.0
  %1119 = vmatpush2.msra.mxu0 0.0
  %1120 = vmatprep.subr.mxu0 0.0
  %1121 = vmatpush2.msra.mxu0 0.0
  %1122 = vmatprep.subr.mxu0 0.0
  %1123 = vmatpush2.msra.mxu0 0.0
  %1124 = vmatprep.mubr.f32.mxu0 0.0
  %1125 = vmatmul.mubr.f32.gmra.mxu0 %v1054
  %v1126 = vpop.f32.mrf.mxu0
  %v1127 = vadd.f32 %v1050, %v1126
  %v1128 = vpop.f32.mrf.mxu0
  %1129 = vdwg.mxu0
  %v1130 = vsub.f32 0.0, %v1127
  %v1131 = vmul.f32 %v1130, 1.442695
  %v1132 = vpow.pop %v1131
  %v1133 = vadd.f32 %v1132, 1.0
  %v1134 = vrcp.pop %v1133
  %v1135 = vmul.f32 1.0, %v1134
  %vm1136 = vcmask 64512
  %1137 = vst.msk [vmem:[%s5] sm:$0xff] %vm1136, %v1135
  // Predicated region
  $region22: #{conv_network_forward.1} parent=0 // pred_check
    _
  $region23: #{conv_network_forward.1} parent=0 // pred_check_branch
    %1139 = sbr.rel (0) target = $region25
  $region24: #{conv_network_forward.1} parent=0 // pred_region
    _
  $region25: #{conv_network_forward.1} parent=0 // pred_fallthru
    _
  // Predicated region
  $region26: #{conv_network_forward.1} parent=0 // pred_check
    _
  $region27: #{conv_network_forward.1} parent=0 // pred_check_branch
    %1141 = sbr.rel (0) target = $region29
  $region28: #{conv_network_forward.1} parent=0 // pred_region
    _
  $region29: #{conv_network_forward.1} parent=0 // pred_fallthru
    _

</llo_original>
